<compile_context>
chip_gen: v6e
topology: v6e:2x2x1
jax: 0.10.0
libtpu: 0.0.40
codegen_flags: <defaults>
</compile_context>

<pallas_src>
import functools
import math

import jax
import jax.numpy as jnp
from jax import lax
from jax.experimental import pallas as pl

# Lane offsets (multiples of 128) of each block inside the packed slabs.
_W_PROJ, _W_SA_OUT, _W_CA_Q, _W_CA_OUT, _W_FFN = 0, 256, 384, 512, 640
_M_HEAD, _M_SA, _M_CA = 0, 128, 256
_NEG_BIG = -1e30


def decoder_layer_kernel(x_ref, mem_ref, w_ref, vec_ref, msk_ref, out_ref, *, num_heads):
    f32, bf16 = jnp.float32, jnp.bfloat16
    x = x_ref[...]                       # (T, E) f32, batch-interleaved text rows
    mem = mem_ref[...]                   # (U, E) f32, batch-interleaved memory rows
    T, E = x.shape
    U = mem.shape[0]
    H = num_heads

    w = w_ref[...]                       # (E, 6*128) bf16 weight slab
    vec = vec_ref[...]                   # (8, 5E)   f32 bias/LN slab
    msk = msk_ref[...]                   # (H*T, 3*128) f32 mask slab

    head_mask = msk[:, _M_HEAD:_M_HEAD + E]          # (HT, E) 0/1 per-head lane mask
    sa_bias = msk[:, _M_SA:_M_SA + T]                # (HT, T) 0 / -1e30 causal+batch
    ca_bias = msk[:, _M_CA:_M_CA + U]                # (HT, U) 0 / -1e30 batch only

    proj_b = vec[0:1, :]                             # (1, 5E) fused qkv/kv bias (q scaled)
    sa_out_b = vec[1:2, 0:E]
    n1_g, n1_b = vec[2:3, 0:E], vec[3:4, 0:E]
    ca_q_b = vec[4:5, 0:E]                           # scaled
    ca_out_b = vec[5:6, 0:E]
    ffn_b = vec[6:7, 0:E]                            # norm_2 bias folded in

    w_proj = w[:, _W_PROJ:_W_PROJ + 5 * E]           # [Wq*s | Wk | Wv | Wk_ca | Wv_ca]
    w_sa_out = w[:, _W_SA_OUT:_W_SA_OUT + E]
    w_ca_q = w[:, _W_CA_Q:_W_CA_Q + E]               # scaled
    w_ca_out = w[:, _W_CA_OUT:_W_CA_OUT + E]
    w_ffn = w[:, _W_FFN:_W_FFN + E]                  # norm_2 gain folded in

    def layernorm(v):                                # plain LN, f32 (affine applied by caller)
        mu = jnp.mean(v, axis=-1, keepdims=True)
        var = jnp.mean((v - mu) ** 2, axis=-1, keepdims=True)
        return (v - mu) * lax.rsqrt(var + 1e-5)

    def mha(q, k, v, bias):
        # q: (T, E) f32 (1/sqrt(Dh) already folded into the projection); k, v: (Uk, E) f32.
        # Head h of token t lives in row h*T + t; lane masking selects its Dh lanes.
        q_rows = jnp.concatenate([q] * H, axis=0) * head_mask               # (HT, E)
        s = lax.dot_general(q_rows.astype(bf16), k.astype(bf16),
                            (((1,), (1,)), ((), ())),
                            preferred_element_type=f32) + bias              # (HT, Uk)
        s = s - jnp.max(s, axis=-1, keepdims=True)
        p = jnp.exp(s)
        p = p * pl.reciprocal(jnp.sum(p, axis=-1, keepdims=True), approx=True)
        o = jnp.dot(p.astype(bf16), v.astype(bf16),
                    preferred_element_type=f32) * head_mask                 # (HT, E)
        acc = o[0:T]                                                        # head "gather":
        for h in range(1, H):                                               # H-1 VPU adds
            acc = acc + o[h * T:(h + 1) * T]
        return acc                                                          # (T, E)

    # ---- fused SA-QKV + CA-KV projection: one MXU pass (cross blocks are discarded) ----
    z = jnp.concatenate([x, mem], axis=0).astype(bf16)                      # (T+U, E)
    proj = jnp.dot(z, w_proj, preferred_element_type=f32) + proj_b          # (T+U, 5E)

    # ---- causal self-attention + add & norm ----
    sa = mha(proj[0:T, 0:E], proj[0:T, E:2 * E], proj[0:T, 2 * E:3 * E], sa_bias)
    sa = jnp.dot(sa.astype(bf16), w_sa_out, preferred_element_type=f32) + sa_out_b
    x1 = layernorm(x + sa) * n1_g + n1_b

    # ---- cross-attention + add & norm ----
    q_ca = jnp.dot(x1.astype(bf16), w_ca_q, preferred_element_type=f32) + ca_q_b
    ca = mha(q_ca, proj[T:T + U, 3 * E:4 * E], proj[T:T + U, 4 * E:5 * E], ca_bias)
    ca = jnp.dot(ca.astype(bf16), w_ca_out, preferred_element_type=f32) + ca_out_b
    x2n = layernorm(x1 + ca)                         # norm_2 affine folded into FFN

    # ---- FFN (Linear E -> E) ----
    out_ref[...] = jnp.dot(x2n.astype(bf16), w_ffn, preferred_element_type=f32) + ffn_b


def decoder_layer_forward(concatenated_features, text_features, operands, *, num_heads):
    """Inputs follow the PyTorch convention: (seq, batch, embed)."""
    L, N, E = text_features.shape
    S = concatenated_features.shape[0]
    T, U = L * N, S * N
    HT = num_heads * T

    # Free row-major reshapes (no transpose / HBM round trip): the kernel works on
    # batch-interleaved token rows; batch isolation + causality come from mask_slab.
    text_flat = text_features.reshape(T, E)
    mem_flat = concatenated_features.reshape(U, E)

    flops = 2 * ((T + U) * E * 5 * E          # fused qkv/kv projection
                 + 2 * HT * E * (T + U)        # scores + p@v for both attentions
                 + 4 * T * E * E)              # sa_out, ca_q, ca_out, ffn
    transcendentals = HT * (T + U) + 2 * HT + 2 * T
    bytes_accessed = (4 * (T + U) * E + 4 * T * E
                      + operands["w_slab"].size * 2
                      + operands["vec_slab"].size * 4
                      + operands["mask_slab"].size * 4)

    out_flat = pl.pallas_call(
        functools.partial(decoder_layer_kernel, num_heads=num_heads),
        out_shape=jax.ShapeDtypeStruct((T, E), jnp.float32),
        cost_estimate=pl.CostEstimate(flops=flops, transcendentals=transcendentals,
                                      bytes_accessed=bytes_accessed),
    )(text_flat, mem_flat, operands["w_slab"], operands["vec_slab"], operands["mask_slab"])

    ffn_features = out_flat.reshape(L, N, E)
    return concatenated_features, ffn_features


def init_params(key, embed_dim):
    """Logical (PyTorch-equivalent) parameters; weights pre-transposed for x @ Wt."""
    E = embed_dim
    ks = jax.random.split(key, 10)
    s = 0.05

    def mat(k, shape):
        return jax.random.normal(k, shape, jnp.float32) * s

    return {
        "sa_in_wt": mat(ks[0], (E, 3 * E)),
        "sa_in_b": jnp.full((3 * E,), 0.01, jnp.float32),
        "sa_out_wt": mat(ks[1], (E, E)),
        "sa_out_b": jnp.full((E,), 0.01, jnp.float32),
        "n1_g": 1.0 + 0.1 * jax.random.normal(ks[5], (E,), jnp.float32),
        "n1_b": 0.05 * jax.random.normal(ks[6], (E,), jnp.float32),
        "ca_in_wt": mat(ks[2], (E, 3 * E)),
        "ca_in_b": jnp.full((3 * E,), 0.02, jnp.float32),
        "ca_out_wt": mat(ks[3], (E, E)),
        "ca_out_b": jnp.full((E,), 0.02, jnp.float32),
        "n2_g": 1.0 + 0.1 * jax.random.normal(ks[7], (E,), jnp.float32),
        "n2_b": 0.05 * jax.random.normal(ks[8], (E,), jnp.float32),
        "ffn_wt": mat(ks[4], (E, E)),
        "ffn_b": jnp.full((E,), 0.03, jnp.float32),
    }


def pack_operands(params, *, L, S, N, num_heads):
    """Host-side, one-time: constant folds + packing into 3 lane-aligned slabs."""
    E = params["ffn_wt"].shape[0]
    H = num_heads
    Dh = E // H
    T, U = L * N, S * N
    HT = H * T
    scale = 1.0 / math.sqrt(Dh)
    f32 = jnp.float32
    assert 5 * E <= 256 and E <= 128 and T <= 128 and U <= 128

    # 1/sqrt(Dh) folded into Q weights/biases.
    sa_in_wt = jnp.concatenate([params["sa_in_wt"][:, :E] * scale,
                                params["sa_in_wt"][:, E:]], axis=1)
    sa_in_b = jnp.concatenate([params["sa_in_b"][:E] * scale, params["sa_in_b"][E:]])
    ca_q_wt = params["ca_in_wt"][:, :E] * scale
    ca_q_b = params["ca_in_b"][:E] * scale
    ca_kv_wt = params["ca_in_wt"][:, E:]
    ca_kv_b = params["ca_in_b"][E:]
    # LayerNorm-2 affine folded into the FFN.
    ffn_wt = params["n2_g"][:, None] * params["ffn_wt"]
    ffn_b = params["n2_b"] @ params["ffn_wt"] + params["ffn_b"]

    # Weight slab (bf16), each block at a 128-lane-aligned offset.
    w_slab = jnp.zeros((E, 6 * 128), f32)
    w_slab = w_slab.at[:, _W_PROJ:_W_PROJ + 5 * E].set(
        jnp.concatenate([sa_in_wt, ca_kv_wt], axis=1))
    w_slab = w_slab.at[:, _W_SA_OUT:_W_SA_OUT + E].set(params["sa_out_wt"])
    w_slab = w_slab.at[:, _W_CA_Q:_W_CA_Q + E].set(ca_q_wt)
    w_slab = w_slab.at[:, _W_CA_OUT:_W_CA_OUT + E].set(params["ca_out_wt"])
    w_slab = w_slab.at[:, _W_FFN:_W_FFN + E].set(ffn_wt)
    w_slab = w_slab.astype(jnp.bfloat16)

    # Bias / LN vector slab (f32).
    vec_slab = jnp.zeros((8, 5 * E), f32)
    vec_slab = vec_slab.at[0, :].set(jnp.concatenate([sa_in_b, ca_kv_b]))
    vec_slab = vec_slab.at[1, :E].set(params["sa_out_b"])
    vec_slab = vec_slab.at[2, :E].set(params["n1_g"])
    vec_slab = vec_slab.at[3, :E].set(params["n1_b"])
    vec_slab = vec_slab.at[4, :E].set(ca_q_b)
    vec_slab = vec_slab.at[5, :E].set(params["ca_out_b"])
    vec_slab = vec_slab.at[6, :E].set(ffn_b)

    # Mask slab (f32): head-lane mask + additive (0 / -1e30) attention biases.
    row = jnp.arange(HT)[:, None]
    tq = row % T                                   # query token row (seq-major interleave)
    lane = jnp.arange(E)[None, :]
    head_mask = (row // T == lane // Dh).astype(f32)
    col_t = jnp.arange(T)[None, :]
    col_u = jnp.arange(U)[None, :]
    sa_keep = ((tq % N) == (col_t % N)) & ((col_t // N) <= (tq // N))   # same batch + causal
    ca_keep = (tq % N) == (col_u % N)                                   # same batch
    mask_slab = jnp.zeros((HT, 3 * 128), f32)
    mask_slab = mask_slab.at[:, _M_HEAD:_M_HEAD + E].set(head_mask)
    mask_slab = mask_slab.at[:, _M_SA:_M_SA + T].set(jnp.where(sa_keep, 0.0, _NEG_BIG))
    mask_slab = mask_slab.at[:, _M_CA:_M_CA + U].set(jnp.where(ca_keep, 0.0, _NEG_BIG))

    return {"w_slab": w_slab, "vec_slab": vec_slab, "mask_slab": mask_slab}


def _reference_forward(concat, text, p, num_heads):
    """Pure-JAX f32 reference of the PyTorch math (sanity check only)."""
    E = text.shape[-1]
    H, Dh = num_heads, E // num_heads

    def mha(q_in, kv_in, w_in, b_in, w_out, b_out, causal):
        L, N, _ = q_in.shape
        S = kv_in.shape[0]
        q = (jnp.einsum("lne,ed->lnd", q_in, w_in[:, :E]) + b_in[:E]).reshape(L, N, H, Dh)
        k = (jnp.einsum("sne,ed->snd", kv_in, w_in[:, E:2 * E]) + b_in[E:2 * E]).reshape(S, N, H, Dh)
        v = (jnp.einsum("sne,ed->snd", kv_in, w_in[:, 2 * E:]) + b_in[2 * E:]).reshape(S, N, H, Dh)
        s = jnp.einsum("lnhd,snhd->nhls", q, k) / math.sqrt(Dh)
        if causal:
            keep = jnp.arange(S)[None, :] <= jnp.arange(L)[:, None]
            s = jnp.where(keep, s, -jnp.inf)
        a = jax.nn.softmax(s, axis=-1)
        o = jnp.einsum("nhls,snhd->lnhd", a, v).reshape(L, N, E)
        return jnp.einsum("lne,ef->lnf", o, w_out) + b_out

    def ln(x, g, b):
        mu = jnp.mean(x, -1, keepdims=True)
        var = jnp.mean((x - mu) ** 2, -1, keepdims=True)
        return (x - mu) / jnp.sqrt(var + 1e-5) * g + b

    sa = mha(text, text, p["sa_in_wt"], p["sa_in_b"], p["sa_out_wt"], p["sa_out_b"], True)
    x1 = ln(text + sa, p["n1_g"], p["n1_b"])
    ca = mha(x1, concat, p["ca_in_wt"], p["ca_in_b"], p["ca_out_wt"], p["ca_out_b"], False)
    x2 = ln(x1 + ca, p["n2_g"], p["n2_b"])
    return jnp.einsum("lne,ef->lnf", x2, p["ffn_wt"]) + p["ffn_b"]


if __name__ == "__main__":
    embed_dim = 32
    num_heads = 4
    L = 8      # text sequence length
    S = 8      # concatenated (memory) sequence length
    N = 2      # batch

    key = jax.random.PRNGKey(0)
    k_text, k_mem, k_params = jax.random.split(key, 3)

    # PyTorch MultiheadAttention layout: (seq, batch, embed)
    text_features = jax.random.normal(k_text, (L, N, embed_dim), jnp.float32)
    concatenated_features = jax.random.normal(k_mem, (S, N, embed_dim), jnp.float32)
    params = init_params(k_params, embed_dim)
    operands = pack_operands(params, L=L, S=S, N=N, num_heads=num_heads)

    fwd = jax.jit(functools.partial(decoder_layer_forward, num_heads=num_heads))
    concat_out, ffn_out = fwd(concatenated_features, text_features, operands)
    jax.block_until_ready((concat_out, ffn_out))

    # Silent correctness check vs f32 reference (bf16 MXU operands + approx softmax
    # reciprocal introduce ~1e-3-scale deviations, hence the loosened tolerance).
    ref = _reference_forward(concatenated_features, text_features, params, num_heads)
    assert ffn_out.shape == (L, N, embed_dim)
    max_err = float(jnp.max(jnp.abs(ffn_out - ref)))
    assert max_err < 2e-2, max_err
    assert jnp.array_equal(concat_out, concatenated_features)

    print("KERNEL_OK")
</pallas_src>

<mosaic_0001>
module attributes {stable_mosaic.version = 11 : i64} {
  func.func @decoder_layer_kernel(%arg0: memref<16x32xf32, #tpu.memory_space<vmem>>, %arg1: memref<16x32xf32, #tpu.memory_space<vmem>>, %arg2: memref<32x768xbf16, #tpu.memory_space<vmem>>, %arg3: memref<8x160xf32, #tpu.memory_space<vmem>>, %arg4: memref<64x384xf32, #tpu.memory_space<vmem>>, %arg5: memref<16x32xf32, #tpu.memory_space<vmem>>) attributes {dimension_semantics = [], scalar_prefetch = 0 : i64, scratch_operands = 0 : i64, tpu.core_type = #tpu.core_type<tc>} {
    %c0 = arith.constant 0 : index
    %c0_0 = arith.constant 0 : index
    %0 = vector.load %arg0[%c0, %c0_0] : memref<16x32xf32, #tpu.memory_space<vmem>>, vector<16x32xf32>
    %c0_1 = arith.constant 0 : index
    %c0_2 = arith.constant 0 : index
    %1 = vector.load %arg1[%c0_1, %c0_2] : memref<16x32xf32, #tpu.memory_space<vmem>>, vector<16x32xf32>
    %c0_3 = arith.constant 0 : index
    %c0_4 = arith.constant 0 : index
    %2 = vector.load %arg2[%c0_3, %c0_4] : memref<32x768xbf16, #tpu.memory_space<vmem>>, vector<32x768xbf16>
    %c0_5 = arith.constant 0 : index
    %c0_6 = arith.constant 0 : index
    %3 = vector.load %arg3[%c0_5, %c0_6] : memref<8x160xf32, #tpu.memory_space<vmem>>, vector<8x160xf32>
    %c0_7 = arith.constant 0 : index
    %c0_8 = arith.constant 0 : index
    %4 = vector.load %arg4[%c0_7, %c0_8] : memref<64x384xf32, #tpu.memory_space<vmem>>, vector<64x384xf32>
    %5 = vector.extract_strided_slice %4 {offsets = [0, 0], sizes = [64, 32], strides = [1, 1]} : vector<64x384xf32> to vector<64x32xf32>
    %6 = vector.extract_strided_slice %4 {offsets = [0, 128], sizes = [64, 16], strides = [1, 1]} : vector<64x384xf32> to vector<64x16xf32>
    %7 = vector.extract_strided_slice %4 {offsets = [0, 256], sizes = [64, 16], strides = [1, 1]} : vector<64x384xf32> to vector<64x16xf32>
    %8 = vector.extract_strided_slice %3 {offsets = [0, 0], sizes = [1, 160], strides = [1, 1]} : vector<8x160xf32> to vector<1x160xf32>
    %9 = vector.extract_strided_slice %3 {offsets = [1, 0], sizes = [1, 32], strides = [1, 1]} : vector<8x160xf32> to vector<1x32xf32>
    %10 = vector.extract_strided_slice %3 {offsets = [2, 0], sizes = [1, 32], strides = [1, 1]} : vector<8x160xf32> to vector<1x32xf32>
    %11 = vector.extract_strided_slice %3 {offsets = [3, 0], sizes = [1, 32], strides = [1, 1]} : vector<8x160xf32> to vector<1x32xf32>
    %12 = vector.extract_strided_slice %3 {offsets = [4, 0], sizes = [1, 32], strides = [1, 1]} : vector<8x160xf32> to vector<1x32xf32>
    %13 = vector.extract_strided_slice %3 {offsets = [5, 0], sizes = [1, 32], strides = [1, 1]} : vector<8x160xf32> to vector<1x32xf32>
    %14 = vector.extract_strided_slice %3 {offsets = [6, 0], sizes = [1, 32], strides = [1, 1]} : vector<8x160xf32> to vector<1x32xf32>
    %15 = vector.extract_strided_slice %2 {offsets = [0, 0], sizes = [32, 160], strides = [1, 1]} : vector<32x768xbf16> to vector<32x160xbf16>
    %16 = vector.extract_strided_slice %2 {offsets = [0, 256], sizes = [32, 32], strides = [1, 1]} : vector<32x768xbf16> to vector<32x32xbf16>
    %17 = vector.extract_strided_slice %2 {offsets = [0, 384], sizes = [32, 32], strides = [1, 1]} : vector<32x768xbf16> to vector<32x32xbf16>
    %18 = vector.extract_strided_slice %2 {offsets = [0, 512], sizes = [32, 32], strides = [1, 1]} : vector<32x768xbf16> to vector<32x32xbf16>
    %19 = vector.extract_strided_slice %2 {offsets = [0, 640], sizes = [32, 32], strides = [1, 1]} : vector<32x768xbf16> to vector<32x32xbf16>
    %20 = tpu.concatenate %0, %1 in 0 : vector<16x32xf32>, vector<16x32xf32> -> vector<32x32xf32>
    %21 = arith.truncf %20 : vector<32x32xf32> to vector<32x32xbf16>
    %cst = arith.constant dense<0.000000e+00> : vector<32x160xf32>
    %22 = tpu.matmul %21, %15, %cst {dimension_numbers = #tpu.dot_dimension_numbers<[1], [0], [0], [1], [0, 0, 1, 1], [], []>} : vector<32x32xbf16>, vector<32x160xbf16>, vector<32x160xf32> -> vector<32x160xf32>
    %23 = vector.broadcast %8 : vector<1x160xf32> to vector<32x160xf32>
    %24 = arith.addf %22, %23 : vector<32x160xf32>
    %25 = vector.extract_strided_slice %24 {offsets = [0, 0], sizes = [16, 32], strides = [1, 1]} : vector<32x160xf32> to vector<16x32xf32>
    %26 = vector.extract_strided_slice %24 {offsets = [0, 32], sizes = [16, 32], strides = [1, 1]} : vector<32x160xf32> to vector<16x32xf32>
    %27 = vector.extract_strided_slice %24 {offsets = [0, 64], sizes = [16, 32], strides = [1, 1]} : vector<32x160xf32> to vector<16x32xf32>
    %28 = tpu.concatenate %25, %25, %25, %25 in 0 : vector<16x32xf32>, vector<16x32xf32>, vector<16x32xf32>, vector<16x32xf32> -> vector<64x32xf32>
    %29 = arith.mulf %28, %5 : vector<64x32xf32>
    %30 = arith.truncf %29 : vector<64x32xf32> to vector<64x32xbf16>
    %31 = arith.truncf %26 : vector<16x32xf32> to vector<16x32xbf16>
    %cst_9 = arith.constant dense<0.000000e+00> : vector<64x16xf32>
    %32 = tpu.matmul %30, %31, %cst_9 {dimension_numbers = #tpu.dot_dimension_numbers<[1], [1], [0], [0], [0, 0, 1, 0], [], []>} : vector<64x32xbf16>, vector<16x32xbf16>, vector<64x16xf32> -> vector<64x16xf32>
    %33 = arith.addf %32, %6 : vector<64x16xf32>
    %cst_10 = arith.constant dense<0xFF800000> : vector<64xf32>
    %34 = vector.multi_reduction <maximumf>, %33, %cst_10 [1] : vector<64x16xf32> to vector<64xf32>
    %35 = vector.shape_cast %34 : vector<64xf32> to vector<64x1xf32>
    %36 = vector.broadcast %35 : vector<64x1xf32> to vector<64x16xf32>
    %37 = arith.subf %33, %36 : vector<64x16xf32>
    %38 = math.exp %37 : vector<64x16xf32>
    %cst_11 = arith.constant dense<0.000000e+00> : vector<64xf32>
    %39 = vector.multi_reduction <add>, %38, %cst_11 [1] : vector<64x16xf32> to vector<64xf32>
    %40 = vector.shape_cast %39 : vector<64xf32> to vector<64x1xf32>
    %41 = tpu.reciprocal %40 {approx = true} : vector<64x1xf32> -> vector<64x1xf32>
    %42 = vector.broadcast %41 : vector<64x1xf32> to vector<64x16xf32>
    %43 = arith.mulf %38, %42 : vector<64x16xf32>
    %44 = arith.truncf %43 : vector<64x16xf32> to vector<64x16xbf16>
    %45 = arith.truncf %27 : vector<16x32xf32> to vector<16x32xbf16>
    %cst_12 = arith.constant dense<0.000000e+00> : vector<64x32xf32>
    %46 = tpu.matmul %44, %45, %cst_12 {dimension_numbers = #tpu.dot_dimension_numbers<[1], [0], [0], [1], [0, 0, 1, 1], [], []>} : vector<64x16xbf16>, vector<16x32xbf16>, vector<64x32xf32> -> vector<64x32xf32>
    %47 = arith.mulf %46, %5 : vector<64x32xf32>
    %48 = vector.extract_strided_slice %47 {offsets = [0, 0], sizes = [16, 32], strides = [1, 1]} : vector<64x32xf32> to vector<16x32xf32>
    %49 = vector.extract_strided_slice %47 {offsets = [16, 0], sizes = [16, 32], strides = [1, 1]} : vector<64x32xf32> to vector<16x32xf32>
    %50 = arith.addf %48, %49 : vector<16x32xf32>
    %51 = vector.extract_strided_slice %47 {offsets = [32, 0], sizes = [16, 32], strides = [1, 1]} : vector<64x32xf32> to vector<16x32xf32>
    %52 = arith.addf %50, %51 : vector<16x32xf32>
    %53 = vector.extract_strided_slice %47 {offsets = [48, 0], sizes = [16, 32], strides = [1, 1]} : vector<64x32xf32> to vector<16x32xf32>
    %54 = arith.addf %52, %53 : vector<16x32xf32>
    %55 = arith.truncf %54 : vector<16x32xf32> to vector<16x32xbf16>
    %cst_13 = arith.constant dense<0.000000e+00> : vector<16x32xf32>
    %56 = tpu.matmul %55, %16, %cst_13 {dimension_numbers = #tpu.dot_dimension_numbers<[1], [0], [0], [1], [0, 0, 1, 1], [], []>} : vector<16x32xbf16>, vector<32x32xbf16>, vector<16x32xf32> -> vector<16x32xf32>
    %57 = vector.broadcast %9 : vector<1x32xf32> to vector<16x32xf32>
    %58 = arith.addf %56, %57 : vector<16x32xf32>
    %59 = arith.addf %0, %58 : vector<16x32xf32>
    %cst_14 = arith.constant dense<0.000000e+00> : vector<16xf32>
    %60 = vector.multi_reduction <add>, %59, %cst_14 [1] : vector<16x32xf32> to vector<16xf32>
    %61 = vector.shape_cast %60 : vector<16xf32> to vector<16x1xf32>
    %cst_15 = arith.constant 3.200000e+01 : f32
    %62 = vector.broadcast %cst_15 : f32 to vector<16x1xf32>
    %63 = arith.divf %61, %62 : vector<16x1xf32>
    %64 = vector.broadcast %63 : vector<16x1xf32> to vector<16x32xf32>
    %65 = arith.subf %59, %64 : vector<16x32xf32>
    %66 = arith.mulf %65, %65 : vector<16x32xf32>
    %cst_16 = arith.constant dense<0.000000e+00> : vector<16xf32>
    %67 = vector.multi_reduction <add>, %66, %cst_16 [1] : vector<16x32xf32> to vector<16xf32>
    %68 = vector.shape_cast %67 : vector<16xf32> to vector<16x1xf32>
    %cst_17 = arith.constant 3.200000e+01 : f32
    %69 = vector.broadcast %cst_17 : f32 to vector<16x1xf32>
    %70 = arith.divf %68, %69 : vector<16x1xf32>
    %71 = vector.broadcast %63 : vector<16x1xf32> to vector<16x32xf32>
    %72 = arith.subf %59, %71 : vector<16x32xf32>
    %cst_18 = arith.constant 9.99999974E-6 : f32
    %73 = vector.broadcast %cst_18 : f32 to vector<16x1xf32>
    %74 = arith.addf %70, %73 : vector<16x1xf32>
    %75 = math.rsqrt %74 : vector<16x1xf32>
    %76 = vector.broadcast %75 : vector<16x1xf32> to vector<16x32xf32>
    %77 = arith.mulf %72, %76 : vector<16x32xf32>
    %78 = vector.broadcast %10 : vector<1x32xf32> to vector<16x32xf32>
    %79 = arith.mulf %77, %78 : vector<16x32xf32>
    %80 = vector.broadcast %11 : vector<1x32xf32> to vector<16x32xf32>
    %81 = arith.addf %79, %80 : vector<16x32xf32>
    %82 = arith.truncf %81 : vector<16x32xf32> to vector<16x32xbf16>
    %cst_19 = arith.constant dense<0.000000e+00> : vector<16x32xf32>
    %83 = tpu.matmul %82, %17, %cst_19 {dimension_numbers = #tpu.dot_dimension_numbers<[1], [0], [0], [1], [0, 0, 1, 1], [], []>} : vector<16x32xbf16>, vector<32x32xbf16>, vector<16x32xf32> -> vector<16x32xf32>
    %84 = vector.broadcast %12 : vector<1x32xf32> to vector<16x32xf32>
    %85 = arith.addf %83, %84 : vector<16x32xf32>
    %86 = vector.extract_strided_slice %24 {offsets = [16, 96], sizes = [16, 32], strides = [1, 1]} : vector<32x160xf32> to vector<16x32xf32>
    %87 = vector.extract_strided_slice %24 {offsets = [16, 128], sizes = [16, 32], strides = [1, 1]} : vector<32x160xf32> to vector<16x32xf32>
    %88 = tpu.concatenate %85, %85, %85, %85 in 0 : vector<16x32xf32>, vector<16x32xf32>, vector<16x32xf32>, vector<16x32xf32> -> vector<64x32xf32>
    %89 = arith.mulf %88, %5 : vector<64x32xf32>
    %90 = arith.truncf %89 : vector<64x32xf32> to vector<64x32xbf16>
    %91 = arith.truncf %86 : vector<16x32xf32> to vector<16x32xbf16>
    %cst_20 = arith.constant dense<0.000000e+00> : vector<64x16xf32>
    %92 = tpu.matmul %90, %91, %cst_20 {dimension_numbers = #tpu.dot_dimension_numbers<[1], [1], [0], [0], [0, 0, 1, 0], [], []>} : vector<64x32xbf16>, vector<16x32xbf16>, vector<64x16xf32> -> vector<64x16xf32>
    %93 = arith.addf %92, %7 : vector<64x16xf32>
    %cst_21 = arith.constant dense<0xFF800000> : vector<64xf32>
    %94 = vector.multi_reduction <maximumf>, %93, %cst_21 [1] : vector<64x16xf32> to vector<64xf32>
    %95 = vector.shape_cast %94 : vector<64xf32> to vector<64x1xf32>
    %96 = vector.broadcast %95 : vector<64x1xf32> to vector<64x16xf32>
    %97 = arith.subf %93, %96 : vector<64x16xf32>
    %98 = math.exp %97 : vector<64x16xf32>
    %cst_22 = arith.constant dense<0.000000e+00> : vector<64xf32>
    %99 = vector.multi_reduction <add>, %98, %cst_22 [1] : vector<64x16xf32> to vector<64xf32>
    %100 = vector.shape_cast %99 : vector<64xf32> to vector<64x1xf32>
    %101 = tpu.reciprocal %100 {approx = true} : vector<64x1xf32> -> vector<64x1xf32>
    %102 = vector.broadcast %101 : vector<64x1xf32> to vector<64x16xf32>
    %103 = arith.mulf %98, %102 : vector<64x16xf32>
    %104 = arith.truncf %103 : vector<64x16xf32> to vector<64x16xbf16>
    %105 = arith.truncf %87 : vector<16x32xf32> to vector<16x32xbf16>
    %cst_23 = arith.constant dense<0.000000e+00> : vector<64x32xf32>
    %106 = tpu.matmul %104, %105, %cst_23 {dimension_numbers = #tpu.dot_dimension_numbers<[1], [0], [0], [1], [0, 0, 1, 1], [], []>} : vector<64x16xbf16>, vector<16x32xbf16>, vector<64x32xf32> -> vector<64x32xf32>
    %107 = arith.mulf %106, %5 : vector<64x32xf32>
    %108 = vector.extract_strided_slice %107 {offsets = [0, 0], sizes = [16, 32], strides = [1, 1]} : vector<64x32xf32> to vector<16x32xf32>
    %109 = vector.extract_strided_slice %107 {offsets = [16, 0], sizes = [16, 32], strides = [1, 1]} : vector<64x32xf32> to vector<16x32xf32>
    %110 = arith.addf %108, %109 : vector<16x32xf32>
    %111 = vector.extract_strided_slice %107 {offsets = [32, 0], sizes = [16, 32], strides = [1, 1]} : vector<64x32xf32> to vector<16x32xf32>
    %112 = arith.addf %110, %111 : vector<16x32xf32>
    %113 = vector.extract_strided_slice %107 {offsets = [48, 0], sizes = [16, 32], strides = [1, 1]} : vector<64x32xf32> to vector<16x32xf32>
    %114 = arith.addf %112, %113 : vector<16x32xf32>
    %115 = arith.truncf %114 : vector<16x32xf32> to vector<16x32xbf16>
    %cst_24 = arith.constant dense<0.000000e+00> : vector<16x32xf32>
    %116 = tpu.matmul %115, %18, %cst_24 {dimension_numbers = #tpu.dot_dimension_numbers<[1], [0], [0], [1], [0, 0, 1, 1], [], []>} : vector<16x32xbf16>, vector<32x32xbf16>, vector<16x32xf32> -> vector<16x32xf32>
    %117 = vector.broadcast %13 : vector<1x32xf32> to vector<16x32xf32>
    %118 = arith.addf %116, %117 : vector<16x32xf32>
    %119 = arith.addf %81, %118 : vector<16x32xf32>
    %cst_25 = arith.constant dense<0.000000e+00> : vector<16xf32>
    %120 = vector.multi_reduction <add>, %119, %cst_25 [1] : vector<16x32xf32> to vector<16xf32>
    %121 = vector.shape_cast %120 : vector<16xf32> to vector<16x1xf32>
    %cst_26 = arith.constant 3.200000e+01 : f32
    %122 = vector.broadcast %cst_26 : f32 to vector<16x1xf32>
    %123 = arith.divf %121, %122 : vector<16x1xf32>
    %124 = vector.broadcast %123 : vector<16x1xf32> to vector<16x32xf32>
    %125 = arith.subf %119, %124 : vector<16x32xf32>
    %126 = arith.mulf %125, %125 : vector<16x32xf32>
    %cst_27 = arith.constant dense<0.000000e+00> : vector<16xf32>
    %127 = vector.multi_reduction <add>, %126, %cst_27 [1] : vector<16x32xf32> to vector<16xf32>
    %128 = vector.shape_cast %127 : vector<16xf32> to vector<16x1xf32>
    %cst_28 = arith.constant 3.200000e+01 : f32
    %129 = vector.broadcast %cst_28 : f32 to vector<16x1xf32>
    %130 = arith.divf %128, %129 : vector<16x1xf32>
    %131 = vector.broadcast %123 : vector<16x1xf32> to vector<16x32xf32>
    %132 = arith.subf %119, %131 : vector<16x32xf32>
    %cst_29 = arith.constant 9.99999974E-6 : f32
    %133 = vector.broadcast %cst_29 : f32 to vector<16x1xf32>
    %134 = arith.addf %130, %133 : vector<16x1xf32>
    %135 = math.rsqrt %134 : vector<16x1xf32>
    %136 = vector.broadcast %135 : vector<16x1xf32> to vector<16x32xf32>
    %137 = arith.mulf %132, %136 : vector<16x32xf32>
    %138 = arith.truncf %137 : vector<16x32xf32> to vector<16x32xbf16>
    %cst_30 = arith.constant dense<0.000000e+00> : vector<16x32xf32>
    %139 = tpu.matmul %138, %19, %cst_30 {dimension_numbers = #tpu.dot_dimension_numbers<[1], [0], [0], [1], [0, 0, 1, 1], [], []>} : vector<16x32xbf16>, vector<32x32xbf16>, vector<16x32xf32> -> vector<16x32xf32>
    %140 = vector.broadcast %14 : vector<1x32xf32> to vector<16x32xf32>
    %141 = arith.addf %139, %140 : vector<16x32xf32>
    %c0_31 = arith.constant 0 : index
    %c0_32 = arith.constant 0 : index
    %142 = vector.load %arg5[%c0_31, %c0_32] : memref<16x32xf32, #tpu.memory_space<vmem>>, vector<16x32xf32>
    tpu.vector_store %arg5[%c0_31, %c0_32], %141 {strides = array<i32>} : memref<16x32xf32, #tpu.memory_space<vmem>>, vector<16x32xf32>,
    return
  }
}

</mosaic_0001>

<llo_original>
// kernel: decoder_layer_forward.1
$region0: #{decoder_layer_forward.1}
  #allocation0 [shape = 'u32[]', space=smem, size = 0x4, offset = 0x4, fixed_abs, tag = 'smem constant byte address 0x4 - core index']
  #allocation1 [shape = 'u32[144,128]{1,0:T(1,128)}', space=vmem, size = 0x12000, scoped, tag = 'internal scratch']
  %s0 = inlined_call_operand.hbm [shape: f32[16,32], index: 0, kind: input, shape index: {}]
  %s1 = inlined_call_operand.hbm [shape: f32[16,32], index: 1, kind: input, shape index: {}]
  %s2 = inlined_call_operand.hbm [shape: bf16[32,768], index: 2, kind: input, shape index: {}]
  %s3 = inlined_call_operand.hbm [shape: f32[8,160], index: 3, kind: input, shape index: {}]
  %s4 = inlined_call_operand.hbm [shape: f32[64,384], index: 4, kind: input, shape index: {}]
  %s5 = inlined_call_operand.hbm [shape: f32[16,32], index: 5, kind: output, shape index: {}]
  %s6 = sld [smem:[#allocation0]]
  $region50: #{decoder_layer_forward.1} parent=0
    _
  %s8 = ssub.s32 1, %s6
  %s9 = scalar_select 0, %s8, %s6
  $region1: #{decoder_layer_forward.1} parent=0
    #allocation2 [shape = 'u8[8192]{0}', space=vmem, size = 0x2000, scoped, tag = 'input window, operand 0, single buffered']
    #allocation3 [shape = 's32[1]{0}', space=sflag, size = 0x4, scoped, tag = 'scoped memory for decoder_layer_forward.1']
    #allocation4 [shape = 's32[1]{0}', space=sflag, size = 0x4, scoped, tag = 'scoped memory for decoder_layer_forward.1']
    #allocation5 [shape = 'u8[8192]{0}', space=vmem, size = 0x2000, scoped, tag = 'input window, operand 1, single buffered']
    #allocation6 [shape = 's32[1]{0}', space=sflag, size = 0x4, scoped, tag = 'scoped memory for decoder_layer_forward.1']
    #allocation7 [shape = 'u8[49152]{0}', space=vmem, size = 0xc000, scoped, tag = 'input window, operand 2, single buffered']
    #allocation8 [shape = 'u8[8192]{0}', space=vmem, size = 0x2000, scoped, tag = 'input window, operand 3, single buffered']
    #allocation9 [shape = 's32[1]{0}', space=sflag, size = 0x4, scoped, tag = 'scoped memory for decoder_layer_forward.1']
    #allocation10 [shape = 'u8[98304]{0}', space=vmem, size = 0x18000, scoped, tag = 'input window, operand 4, single buffered']
    #allocation11 [shape = 'u8[8192]{0}', space=vmem, size = 0x2000, scoped, tag = 'output window, operand 0, single buffered']
    %10 = vsyncpa [#allocation3], 0
    %11 = vsyncpa [#allocation6], 0
    %12 = vsyncpa [#allocation9], 0
    %13 = vsyncpa [#allocation4], 0
    // Predicated region
    $region2: #{decoder_layer_forward.1} parent=1 // pred_check
      _
    $region3: #{decoder_layer_forward.1} parent=1 // pred_check_branch
      %15 = sbr.rel (0) target = $region5
    $region4: #{decoder_layer_forward.1} parent=1 // pred_region
      %s17 = ssub.s32 256, 256
      %18 = vsyncadd [#allocation3], %s17
      %s19 = sshll.u32 [#allocation2], 4
      %s20 = int_to_ptr.vmem [resolvable:$true] %s19
      %25 = dma.hbm_to_vmem [thread:$0]  %s0, 256, %s20, [#allocation3], 128, 128, 8
    $region5: #{decoder_layer_forward.1} parent=1 // pred_fallthru
      _
    // Predicated region
    $region6: #{decoder_layer_forward.1} parent=1 // pred_check
      _
    $region7: #{decoder_layer_forward.1} parent=1 // pred_check_branch
      %27 = sbr.rel (0) target = $region9
    $region8: #{decoder_layer_forward.1} parent=1 // pred_region
      %s29 = ssub.s32 256, 256
      %30 = vsyncadd [#allocation6], %s29
      %s31 = sshll.u32 [#allocation5], 4
      %s32 = int_to_ptr.vmem [resolvable:$true] %s31
      %37 = dma.hbm_to_vmem [thread:$0]  %s1, 256, %s32, [#allocation6], 128, 128, 8
    $region9: #{decoder_layer_forward.1} parent=1 // pred_fallthru
      _
    // Predicated region
    $region10: #{decoder_layer_forward.1} parent=1 // pred_check
      _
    $region11: #{decoder_layer_forward.1} parent=1 // pred_check_branch
      %39 = sbr.rel (0) target = $region13
    $region12: #{decoder_layer_forward.1} parent=1 // pred_region
      %s41 = ssub.s32 1536, 1536
      %42 = vsyncadd [#allocation6], %s41
      %s43 = sshll.u32 [#allocation7], 4
      %s44 = int_to_ptr.vmem [resolvable:$true] %s43
      %49 = dma.hbm_to_vmem [thread:$0]  %s2, 1536, %s44, [#allocation6], 384, 384, 24
    $region13: #{decoder_layer_forward.1} parent=1 // pred_fallthru
      _
    // Predicated region
    $region14: #{decoder_layer_forward.1} parent=1 // pred_check
      _
    $region15: #{decoder_layer_forward.1} parent=1 // pred_check_branch
      %51 = sbr.rel (0) target = $region17
    $region16: #{decoder_layer_forward.1} parent=1 // pred_region
      %s53 = ssub.s32 256, 256
      %54 = vsyncadd [#allocation9], %s53
      %s56 = sshll.u32 [#allocation8], 4
      %s57 = int_to_ptr.vmem [resolvable:$true] %s56
      %59 = dma.hbm_to_vmem [thread:$0]  %s3, 256, %s57, [#allocation9]
    $region17: #{decoder_layer_forward.1} parent=1 // pred_fallthru
      _
    // Predicated region
    $region18: #{decoder_layer_forward.1} parent=1 // pred_check
      _
    $region19: #{decoder_layer_forward.1} parent=1 // pred_check_branch
      %61 = sbr.rel (0) target = $region21
    $region20: #{decoder_layer_forward.1} parent=1 // pred_region
      %s63 = ssub.s32 3072, 3072
      %64 = vsyncadd [#allocation9], %s63
      %s65 = sshll.u32 [#allocation10], 4
      %s66 = int_to_ptr.vmem [resolvable:$true] %s65
      %71 = dma.hbm_to_vmem [thread:$0]  %s4, 3072, %s66, [#allocation9], 384, 384, 24
    $region21: #{decoder_layer_forward.1} parent=1 // pred_fallthru
      _
    // Predicated region
    $region22: #{decoder_layer_forward.1} parent=1 // pred_check
      _
    $region23: #{decoder_layer_forward.1} parent=1 // pred_check_branch
      %73 = sbr.rel (0) target = $region25
    $region24: #{decoder_layer_forward.1} parent=1 // pred_region
      %74 = dma.done [#allocation3], 256
    $region25: #{decoder_layer_forward.1} parent=1 // pred_fallthru
      _
    // Predicated region
    $region26: #{decoder_layer_forward.1} parent=1 // pred_check
      _
    $region27: #{decoder_layer_forward.1} parent=1 // pred_check_branch
      %76 = sbr.rel (0) target = $region29
    $region28: #{decoder_layer_forward.1} parent=1 // pred_region
      %77 = dma.done [#allocation6], 256
    $region29: #{decoder_layer_forward.1} parent=1 // pred_fallthru
      _
    // Predicated region
    $region30: #{decoder_layer_forward.1} parent=1 // pred_check
      _
    $region31: #{decoder_layer_forward.1} parent=1 // pred_check_branch
      %79 = sbr.rel (0) target = $region33
    $region32: #{decoder_layer_forward.1} parent=1 // pred_region
      %80 = dma.done [#allocation6], 1536
    $region33: #{decoder_layer_forward.1} parent=1 // pred_fallthru
      _
    // Predicated region
    $region34: #{decoder_layer_forward.1} parent=1 // pred_check
      _
    $region35: #{decoder_layer_forward.1} parent=1 // pred_check_branch
      %82 = sbr.rel (0) target = $region37
    $region36: #{decoder_layer_forward.1} parent=1 // pred_region
      %83 = dma.done [#allocation9], 256
    $region37: #{decoder_layer_forward.1} parent=1 // pred_fallthru
      _
    // Predicated region
    $region38: #{decoder_layer_forward.1} parent=1 // pred_check
      _
    $region39: #{decoder_layer_forward.1} parent=1 // pred_check_branch
      %85 = sbr.rel (0) target = $region41
    $region40: #{decoder_layer_forward.1} parent=1 // pred_region
      %86 = dma.done [#allocation9], 3072
    $region41: #{decoder_layer_forward.1} parent=1 // pred_fallthru
      _
    %v88 = vld [vmem:[#allocation2] sm:$0xff]
    %v89 = vld [vmem:[#allocation2 + $0x8] sm:$0xff]
    %v90 = vld [vmem:[#allocation5] sm:$0xff]
    %v91 = vld [vmem:[#allocation5 + $0x8] sm:$0xff]
    %v92 = vld [vmem:[#allocation7] sm:$0xff]
    %v93 = vld [vmem:[#allocation7 + $0x8] sm:$0xff]
    %v94 = vld [vmem:[#allocation7 + $0x10] sm:$0xff]
    %v95 = vld [vmem:[#allocation7 + $0x18] sm:$0xff]
    %v96 = vld [vmem:[#allocation7 + $0x20] sm:$0xff]
    %v97 = vld [vmem:[#allocation7 + $0x28] sm:$0xff]
    %v98 = vld [vmem:[#allocation7 + $0x30] sm:$0xff]
    %v99 = vld [vmem:[#allocation7 + $0x38] sm:$0xff]
    %v100 = vld [vmem:[#allocation7 + $0x40] sm:$0xff]
    %v101 = vld [vmem:[#allocation7 + $0x48] sm:$0xff]
    %v102 = vld [vmem:[#allocation7 + $0x50] sm:$0xff]
    %v103 = vld [vmem:[#allocation7 + $0x58] sm:$0xff]
    %v104 = vld [vmem:[#allocation8] sm:$0xff]
    %v105 = vld [vmem:[#allocation8 + $0x8] sm:$0xff]
    %v106 = vld [vmem:[#allocation10] sm:$0xff]
    %v107 = vld [vmem:[#allocation10 + $0x8] sm:$0xff]
    %v108 = vld [vmem:[#allocation10 + $0x10] sm:$0xff]
    %v109 = vld [vmem:[#allocation10 + $0x18] sm:$0xff]
    %v110 = vld [vmem:[#allocation10 + $0x20] sm:$0xff]
    %v111 = vld [vmem:[#allocation10 + $0x28] sm:$0xff]
    %v112 = vld [vmem:[#allocation10 + $0x30] sm:$0xff]
    %v113 = vld [vmem:[#allocation10 + $0x38] sm:$0xff]
    %v114 = vld [vmem:[#allocation10 + $0x40] sm:$0xff]
    %v115 = vld [vmem:[#allocation10 + $0x48] sm:$0xff]
    %v116 = vld [vmem:[#allocation10 + $0x50] sm:$0xff]
    %v117 = vld [vmem:[#allocation10 + $0x58] sm:$0xff]
    %v118 = vld [vmem:[#allocation10 + $0x60] sm:$0xff]
    %v119 = vld [vmem:[#allocation10 + $0x68] sm:$0xff]
    %v120 = vld [vmem:[#allocation10 + $0x70] sm:$0xff]
    %v121 = vld [vmem:[#allocation10 + $0x78] sm:$0xff]
    %v122 = vld [vmem:[#allocation10 + $0x80] sm:$0xff]
    %v123 = vld [vmem:[#allocation10 + $0x88] sm:$0xff]
    %v124 = vld [vmem:[#allocation10 + $0x90] sm:$0xff]
    %v125 = vld [vmem:[#allocation10 + $0x98] sm:$0xff]
    %v126 = vld [vmem:[#allocation10 + $0xa0] sm:$0xff]
    %v127 = vld [vmem:[#allocation10 + $0xa8] sm:$0xff]
    %v128 = vld [vmem:[#allocation10 + $0xb0] sm:$0xff]
    %v129 = vld [vmem:[#allocation10 + $0xb8] sm:$0xff]
    %v130 = vpack.c.bf16 %v89, %v88
    %v131 = vpack.c.bf16 %v91, %v90
    %v132 = vlaneseq
    %v133 = vshrl.u32 %v132, 7
    %v134 = vsub.s32 0, %v133
    %v135 = vrot.slane %v104, %v134
    %v136 = vlaneseq
    %v137 = vshrl.u32 %v136, 7
    %v138 = vsub.s32 0, %v137
    %v139 = vrot.slane %v105, %v138
    %v144 = vunpack.c.l.b16 %v92
    %v145 = vunpack.c.h.b16 %v92
    %v146 = vunpack.c.l.b16 %v95
    %v147 = vunpack.c.h.b16 %v95
    %v148 = vunpack.c.l.b16 %v98
    %v149 = vunpack.c.h.b16 %v98
    %v150 = vunpack.c.l.b16 %v101
    %v151 = vunpack.c.h.b16 %v101
    %v152 = vpack.c.b16 %v146, %v144
    %v153 = vpack.c.b16 %v147, %v145
    %v154 = vpack.c.b16 %v150, %v148
    %v155 = vpack.c.b16 %v151, %v149
    %vm160 = vcmask 261120
    %v162 = vsel %vm160, %v130, 0
    %v165 = vsel %vm160, %v131, 0
    %167 = vmatprep.subr.bf16.mxu0 0
    %168 = vmatpush1.bf16.msra.mxu0 0
    %169 = vmatprep.subr.bf16.mxu0 0
    %170 = vmatpush1.bf16.msra.mxu0 0
    %171 = vmatprep.subr.bf16.mxu0 0
    %172 = vmatpush1.bf16.msra.mxu0 0
    %173 = vmatprep.subr.bf16.mxu0 0
    %174 = vmatpush1.bf16.msra.mxu0 0
    %175 = vmatprep.subr.bf16.mxu0 0
    %176 = vmatpush1.bf16.msra.mxu0 0
    %177 = vmatprep.subr.bf16.mxu0 0
    %178 = vmatpush1.bf16.msra.mxu0 0
    %179 = vmatprep.subr.bf16.mxu0 %v155
    %180 = vmatpush1.bf16.msra.mxu0 %v154
    %181 = vmatprep.subr.bf16.mxu0 %v153
    %182 = vmatpush1.bf16.msra.mxu0 %v152
    %183 = vmatprep.subr.bf16.mxu0 0
    %184 = vmatpush2.bf16.msra.mxu0 0
    %185 = vmatprep.subr.bf16.mxu0 0
    %186 = vmatpush2.bf16.msra.mxu0 0
    %187 = vmatprep.subr.bf16.mxu0 0
    %188 = vmatpush2.bf16.msra.mxu0 0
    %189 = vmatprep.subr.bf16.mxu0 0
    %190 = vmatpush2.bf16.msra.mxu0 0
    %191 = vmatprep.subr.bf16.mxu0 0
    %192 = vmatpush2.bf16.msra.mxu0 0
    %193 = vmatprep.subr.bf16.mxu0 0
    %194 = vmatpush2.bf16.msra.mxu0 0
    %195 = vmatprep.subr.bf16.mxu0 0
    %196 = vmatpush2.bf16.msra.mxu0 0
    %197 = vmatprep.subr.bf16.mxu0 0
    %198 = vmatpush2.bf16.msra.mxu0 0
    %199 = vmatprep.mubr.bf16.mxu0 0
    %200 = vmatmul.mubr.bf16.gmra.mxu0 %v162
    %v201 = vpop.f32.mrf.mxu0
    %v202 = vadd.f32 %v135, %v201
    %v203 = vpop.f32.mrf.mxu0
    %v204 = vpop.f32.mrf.mxu0
    %v205 = vadd.f32 %v135, %v204
    %v206 = vpop.f32.mrf.mxu0
    %207 = vmatprep.mubr.bf16.mxu0 0
    %208 = vmatmul.mubr.bf16.gmra.mxu0 %v165
    %v209 = vpop.f32.mrf.mxu0
    %v210 = vadd.f32 %v135, %v209
    %v211 = vpop.f32.mrf.mxu0
    %v212 = vadd.f32 %v139, %v211
    %v213 = vpop.f32.mrf.mxu0
    %v214 = vadd.f32 %v135, %v213
    %v215 = vpop.f32.mrf.mxu0
    %v216 = vadd.f32 %v139, %v215
    %217 = vdwg.mxu0
    %v218 = vmul.f32 %v202, %v106
    %v219 = vmul.f32 %v205, %v109
    %v220 = vmul.f32 %v202, %v112
    %v221 = vmul.f32 %v205, %v115
    %v222 = vmul.f32 %v202, %v118
    %v223 = vmul.f32 %v205, %v121
    %v224 = vmul.f32 %v202, %v124
    %v225 = vmul.f32 %v205, %v127
    %v226 = vpack.c.bf16 %v219, %v218
    %v227 = vpack.c.bf16 %v221, %v220
    %v228 = vpack.c.bf16 %v223, %v222
    %v229 = vpack.c.bf16 %v225, %v224
    %v230 = vpack.c.bf16 %v205, %v202
    %232 = vrot.lane.b32.xlu0 %v230, 96
    %v233 = vpop.permute.xlu0 %232
    %v235 = vsel %vm160, %v226, 0
    %v238 = vsel %vm160, %v227, 0
    %v241 = vsel %vm160, %v228, 0
    %v244 = vsel %vm160, %v229, 0
    %v247 = vsel %vm160, %v233, 0
    %249 = vmatprep.subr.bf16.mxu0 0
    %250 = vmatpush1.bf16.xpose.msra.mxu0 0
    %251 = vmatprep.subr.bf16.mxu0 0
    %252 = vmatpush1.bf16.xpose.msra.mxu0 0
    %253 = vmatprep.subr.bf16.mxu0 0
    %254 = vmatpush1.bf16.xpose.msra.mxu0 0
    %255 = vmatprep.subr.bf16.mxu0 0
    %256 = vmatpush1.bf16.xpose.msra.mxu0 0
    %257 = vmatprep.subr.bf16.mxu0 0
    %258 = vmatpush1.bf16.xpose.msra.mxu0 0
    %259 = vmatprep.subr.bf16.mxu0 0
    %260 = vmatpush1.bf16.xpose.msra.mxu0 0
    %261 = vmatprep.subr.bf16.mxu0 0
    %262 = vmatpush1.bf16.xpose.msra.mxu0 0
    %263 = vmatprep.subr.bf16.mxu0 0
    %264 = vmatpush1.bf16.xpose.msra.mxu0 %v247
    %265 = vmatprep.subr.bf16.mxu0 0
    %266 = vmatpush2.bf16.xpose.msra.mxu0 0
    %267 = vmatprep.subr.bf16.mxu0 0
    %268 = vmatpush2.bf16.xpose.msra.mxu0 0
    %269 = vmatprep.subr.bf16.mxu0 0
    %270 = vmatpush2.bf16.xpose.msra.mxu0 0
    %271 = vmatprep.subr.bf16.mxu0 0
    %272 = vmatpush2.bf16.xpose.msra.mxu0 0
    %273 = vmatprep.subr.bf16.mxu0 0
    %274 = vmatpush2.bf16.xpose.msra.mxu0 0
    %275 = vmatprep.subr.bf16.mxu0 0
    %276 = vmatpush2.bf16.xpose.msra.mxu0 0
    %277 = vmatprep.subr.bf16.mxu0 0
    %278 = vmatpush2.bf16.xpose.msra.mxu0 0
    %279 = vmatprep.subr.bf16.mxu0 0
    %280 = vmatpush2.bf16.xpose.msra.mxu0 0
    %281 = vmatprep.mubr.bf16.mxu0 0
    %282 = vmatmul.mubr.bf16.gmra.mxu0 %v235
    %v283 = vpop.f32.mrf.mxu0
    %v284 = vadd.f32 %v107, %v283
    %v285 = vpop.f32.mrf.mxu0
    %v286 = vpop.f32.mrf.mxu0
    %v287 = vadd.f32 %v110, %v286
    %v288 = vpop.f32.mrf.mxu0
    %289 = vmatprep.mubr.bf16.mxu0 0
    %290 = vmatmul.mubr.bf16.gmra.mxu0 %v238
    %v291 = vpop.f32.mrf.mxu0
    %v292 = vadd.f32 %v113, %v291
    %v293 = vpop.f32.mrf.mxu0
    %v294 = vpop.f32.mrf.mxu0
    %v295 = vadd.f32 %v116, %v294
    %v296 = vpop.f32.mrf.mxu0
    %297 = vmatprep.mubr.bf16.mxu0 0
    %298 = vmatmul.mubr.bf16.gmra.mxu0 %v241
    %v299 = vpop.f32.mrf.mxu0
    %v300 = vadd.f32 %v119, %v299
    %v301 = vpop.f32.mrf.mxu0
    %v302 = vpop.f32.mrf.mxu0
    %v303 = vadd.f32 %v122, %v302
    %v304 = vpop.f32.mrf.mxu0
    %305 = vmatprep.mubr.bf16.mxu0 0
    %306 = vmatmul.mubr.bf16.gmra.mxu0 %v244
    %v307 = vpop.f32.mrf.mxu0
    %v308 = vadd.f32 %v125, %v307
    %v309 = vpop.f32.mrf.mxu0
    %v310 = vpop.f32.mrf.mxu0
    %v311 = vadd.f32 %v128, %v310
    %v312 = vpop.f32.mrf.mxu0
    %313 = vdwg.mxu0
    %vm314 = vcmask 130048
    %v315 = vsel %vm314, %v284, -inf
    %316 = vmax.xlane.f32.xlu0 %v315
    %v317 = vpop.xlane.xlu0 %316
    %v318 = vsel %vm314, %v287, -inf
    %319 = vmax.xlane.f32.xlu0 %v318
    %v320 = vpop.xlane.xlu0 %319
    %v321 = vsel %vm314, %v292, -inf
    %322 = vmax.xlane.f32.xlu0 %v321
    %v323 = vpop.xlane.xlu0 %322
    %v324 = vsel %vm314, %v295, -inf
    %325 = vmax.xlane.f32.xlu0 %v324
    %v326 = vpop.xlane.xlu0 %325
    %v327 = vsel %vm314, %v300, -inf
    %328 = vmax.xlane.f32.xlu0 %v327
    %v329 = vpop.xlane.xlu0 %328
    %v330 = vsel %vm314, %v303, -inf
    %331 = vmax.xlane.f32.xlu0 %v330
    %v332 = vpop.xlane.xlu0 %331
    %v333 = vsel %vm314, %v308, -inf
    %334 = vmax.xlane.f32.xlu0 %v333
    %v335 = vpop.xlane.xlu0 %334
    %v336 = vsel %vm314, %v311, -inf
    %337 = vmax.xlane.f32.xlu0 %v336
    %v338 = vpop.xlane.xlu0 %337
    %v339 = vsub.f32 %v284, %v317
    %v340 = vsub.f32 %v287, %v320
    %v341 = vsub.f32 %v292, %v323
    %v342 = vsub.f32 %v295, %v326
    %v343 = vsub.f32 %v300, %v329
    %v344 = vsub.f32 %v303, %v332
    %v345 = vsub.f32 %v308, %v335
    %v346 = vsub.f32 %v311, %v338
    %v347 = vmul.f32 %v339, 1.442695
    %v348 = vpow.pop %v347
    %v349 = vmul.f32 %v340, 1.442695
    %v350 = vpow.pop %v349
    %v351 = vmul.f32 %v341, 1.442695
    %v352 = vpow.pop %v351
    %v353 = vmul.f32 %v342, 1.442695
    %v354 = vpow.pop %v353
    %v355 = vmul.f32 %v343, 1.442695
    %v356 = vpow.pop %v355
    %v357 = vmul.f32 %v344, 1.442695
    %v358 = vpow.pop %v357
    %v359 = vmul.f32 %v345, 1.442695
    %v360 = vpow.pop %v359
    %v361 = vmul.f32 %v346, 1.442695
    %v362 = vpow.pop %v361
    %v363 = vsel %vm314, %v348, 0.0
    %364 = vadd.xlane.f32.xlu0 %v363
    %v365 = vpop.xlane.xlu0 %364
    %v366 = vsel %vm314, %v350, 0.0
    %367 = vadd.xlane.f32.xlu0 %v366
    %v368 = vpop.xlane.xlu0 %367
    %v369 = vsel %vm314, %v352, 0.0
    %370 = vadd.xlane.f32.xlu0 %v369
    %v371 = vpop.xlane.xlu0 %370
    %v372 = vsel %vm314, %v354, 0.0
    %373 = vadd.xlane.f32.xlu0 %v372
    %v374 = vpop.xlane.xlu0 %373
    %v375 = vsel %vm314, %v356, 0.0
    %376 = vadd.xlane.f32.xlu0 %v375
    %v377 = vpop.xlane.xlu0 %376
    %v378 = vsel %vm314, %v358, 0.0
    %379 = vadd.xlane.f32.xlu0 %v378
    %v380 = vpop.xlane.xlu0 %379
    %v381 = vsel %vm314, %v360, 0.0
    %382 = vadd.xlane.f32.xlu0 %v381
    %v383 = vpop.xlane.xlu0 %382
    %v384 = vsel %vm314, %v362, 0.0
    %385 = vadd.xlane.f32.xlu0 %v384
    %v386 = vpop.xlane.xlu0 %385
    %v387 = vrcp.pop %v365
    %v388 = vrcp.pop %v368
    %v389 = vrcp.pop %v371
    %v390 = vrcp.pop %v374
    %v391 = vrcp.pop %v377
    %v392 = vrcp.pop %v380
    %v393 = vrcp.pop %v383
    %v394 = vrcp.pop %v386
    %v395 = vmul.f32 %v348, %v387
    %v396 = vmul.f32 %v350, %v388
    %v397 = vmul.f32 %v352, %v389
    %v398 = vmul.f32 %v354, %v390
    %v399 = vmul.f32 %v356, %v391
    %v400 = vmul.f32 %v358, %v392
    %v401 = vmul.f32 %v360, %v393
    %v402 = vmul.f32 %v362, %v394
    %v403 = vpack.c.bf16 %v396, %v395
    %v404 = vpack.c.bf16 %v398, %v397
    %v405 = vpack.c.bf16 %v400, %v399
    %v406 = vpack.c.bf16 %v402, %v401
    %407 = vrot.lane.b32.xlu0 %v230, 64
    %v408 = vpop.permute.xlu0 %407
    %v411 = vsel %vm314, %v403, 0
    %v414 = vsel %vm314, %v404, 0
    %v417 = vsel %vm314, %v405, 0
    %v420 = vsel %vm314, %v406, 0
    %422 = vmatprep.subr.bf16.mxu0 0
    %423 = vmatpush1.bf16.msra.mxu0 0
    %424 = vmatprep.subr.bf16.mxu0 0
    %425 = vmatpush1.bf16.msra.mxu0 0
    %426 = vmatprep.subr.bf16.mxu0 0
    %427 = vmatpush1.bf16.msra.mxu0 0
    %428 = vmatprep.subr.bf16.mxu0 0
    %429 = vmatpush1.bf16.msra.mxu0 0
    %430 = vmatprep.subr.bf16.mxu0 0
    %431 = vmatpush1.bf16.msra.mxu0 0
    %432 = vmatprep.subr.bf16.mxu0 0
    %433 = vmatpush1.bf16.msra.mxu0 0
    %434 = vmatprep.subr.bf16.mxu0 0
    %435 = vmatpush1.bf16.msra.mxu0 0
    %436 = vmatprep.subr.bf16.mxu0 0
    %437 = vmatpush1.bf16.msra.mxu0 %v408
    %438 = vmatprep.subr.bf16.mxu0 0
    %439 = vmatpush2.bf16.msra.mxu0 0
    %440 = vmatprep.subr.bf16.mxu0 0
    %441 = vmatpush2.bf16.msra.mxu0 0
    %442 = vmatprep.subr.bf16.mxu0 0
    %443 = vmatpush2.bf16.msra.mxu0 0
    %444 = vmatprep.subr.bf16.mxu0 0
    %445 = vmatpush2.bf16.msra.mxu0 0
    %446 = vmatprep.subr.bf16.mxu0 0
    %447 = vmatpush2.bf16.msra.mxu0 0
    %448 = vmatprep.subr.bf16.mxu0 0
    %449 = vmatpush2.bf16.msra.mxu0 0
    %450 = vmatprep.subr.bf16.mxu0 0
    %451 = vmatpush2.bf16.msra.mxu0 0
    %452 = vmatprep.subr.bf16.mxu0 0
    %453 = vmatpush2.bf16.msra.mxu0 0
    %454 = vmatprep.mubr.bf16.mxu0 0
    %455 = vmatmul.mubr.bf16.gmra.mxu0 %v411
    %v456 = vpop.f32.mrf.mxu0
    %v457 = vadd.f32 0.0, %v456
    %v458 = vpop.f32.mrf.mxu0
    %v459 = vpop.f32.mrf.mxu0
    %v460 = vadd.f32 0.0, %v459
    %v461 = vpop.f32.mrf.mxu0
    %462 = vmatprep.mubr.bf16.mxu0 0
    %463 = vmatmul.mubr.bf16.gmra.mxu0 %v414
    %v464 = vpop.f32.mrf.mxu0
    %v465 = vadd.f32 0.0, %v464
    %v466 = vpop.f32.mrf.mxu0
    %v467 = vpop.f32.mrf.mxu0
    %v468 = vadd.f32 0.0, %v467
    %v469 = vpop.f32.mrf.mxu0
    %470 = vmatprep.mubr.bf16.mxu0 0
    %471 = vmatmul.mubr.bf16.gmra.mxu0 %v417
    %v472 = vpop.f32.mrf.mxu0
    %v473 = vadd.f32 0.0, %v472
    %v474 = vpop.f32.mrf.mxu0
    %v475 = vpop.f32.mrf.mxu0
    %v476 = vadd.f32 0.0, %v475
    %v477 = vpop.f32.mrf.mxu0
    %478 = vmatprep.mubr.bf16.mxu0 0
    %479 = vmatmul.mubr.bf16.gmra.mxu0 %v420
    %v480 = vpop.f32.mrf.mxu0
    %v481 = vadd.f32 0.0, %v480
    %v482 = vpop.f32.mrf.mxu0
    %v483 = vpop.f32.mrf.mxu0
    %v484 = vadd.f32 0.0, %v483
    %v485 = vpop.f32.mrf.mxu0
    %486 = vdwg.mxu0
    %v487 = vmul.f32 %v457, %v106
    %v488 = vmul.f32 %v460, %v109
    %v489 = vmul.f32 %v465, %v112
    %v490 = vmul.f32 %v468, %v115
    %v491 = vmul.f32 %v473, %v118
    %v492 = vmul.f32 %v476, %v121
    %v493 = vmul.f32 %v481, %v124
    %v494 = vmul.f32 %v484, %v127
    %v495 = vadd.f32 %v487, %v489
    %v496 = vadd.f32 %v488, %v490
    %v497 = vadd.f32 %v495, %v491
    %v498 = vadd.f32 %v496, %v492
    %v499 = vadd.f32 %v497, %v493
    %v500 = vadd.f32 %v498, %v494
    %v501 = vpack.c.bf16 %v500, %v499
    %v502 = vlaneseq
    %v503 = vshrl.u32 %v502, 7
    %v504 = vsub.s32 1, %v503
    %v505 = vrot.slane %v104, %v504
    %v510 = vunpack.c.l.b16 %v93
    %v511 = vunpack.c.l.b16 %v96
    %v512 = vunpack.c.l.b16 %v99
    %v513 = vunpack.c.l.b16 %v102
    %v514 = vpack.c.b16 %v511, %v510
    %v515 = vpack.c.b16 %v513, %v512
    %v519 = vsel %vm160, %v501, 0
    %521 = vmatprep.subr.bf16.mxu0 0
    %522 = vmatpush1.bf16.msra.mxu0 0
    %523 = vmatprep.subr.bf16.mxu0 0
    %524 = vmatpush1.bf16.msra.mxu0 0
    %525 = vmatprep.subr.bf16.mxu0 0
    %526 = vmatpush1.bf16.msra.mxu0 0
    %527 = vmatprep.subr.bf16.mxu0 0
    %528 = vmatpush1.bf16.msra.mxu0 0
    %529 = vmatprep.subr.bf16.mxu0 0
    %530 = vmatpush1.bf16.msra.mxu0 0
    %531 = vmatprep.subr.bf16.mxu0 0
    %532 = vmatpush1.bf16.msra.mxu0 0
    %533 = vmatprep.subr.bf16.mxu0 0
    %534 = vmatpush1.bf16.msra.mxu0 %v515
    %535 = vmatprep.subr.bf16.mxu0 0
    %536 = vmatpush1.bf16.msra.mxu0 %v514
    %537 = vmatprep.subr.bf16.mxu0 0
    %538 = vmatpush2.bf16.msra.mxu0 0
    %539 = vmatprep.subr.bf16.mxu0 0
    %540 = vmatpush2.bf16.msra.mxu0 0
    %541 = vmatprep.subr.bf16.mxu0 0
    %542 = vmatpush2.bf16.msra.mxu0 0
    %543 = vmatprep.subr.bf16.mxu0 0
    %544 = vmatpush2.bf16.msra.mxu0 0
    %545 = vmatprep.subr.bf16.mxu0 0
    %546 = vmatpush2.bf16.msra.mxu0 0
    %547 = vmatprep.subr.bf16.mxu0 0
    %548 = vmatpush2.bf16.msra.mxu0 0
    %549 = vmatprep.subr.bf16.mxu0 0
    %550 = vmatpush2.bf16.msra.mxu0 0
    %551 = vmatprep.subr.bf16.mxu0 0
    %552 = vmatpush2.bf16.msra.mxu0 0
    %553 = vmatprep.mubr.bf16.mxu0 0
    %554 = vmatmul.mubr.bf16.gmra.mxu0 %v519
    %v555 = vpop.f32.mrf.mxu0
    %v556 = vadd.f32 %v505, %v555
    %v557 = vpop.f32.mrf.mxu0
    %v558 = vpop.f32.mrf.mxu0
    %v559 = vadd.f32 %v505, %v558
    %v560 = vpop.f32.mrf.mxu0
    %561 = vdwg.mxu0
    %v562 = vadd.f32 %v88, %v556
    %v563 = vadd.f32 %v89, %v559
    %v564 = vsel %vm160, %v562, 0.0
    %565 = vadd.xlane.f32.xlu0 %v564
    %v566 = vpop.xlane.xlu0 %565
    %v567 = vsel %vm160, %v563, 0.0
    %568 = vadd.xlane.f32.xlu0 %v567
    %v569 = vpop.xlane.xlu0 %568
    %v570 = vrcp.pop 32.0
    %v571 = vmul.f32 %v566, %v570
    %v572 = vmul.f32 %v569, %v570
    %v573 = vsub.f32 %v562, %v571
    %v574 = vsub.f32 %v563, %v572
    %v575 = vmul.f32 %v573, %v573
    %v576 = vmul.f32 %v574, %v574
    %v577 = vsel %vm160, %v575, 0.0
    %578 = vadd.xlane.f32.xlu0 %v577
    %v579 = vpop.xlane.xlu0 %578
    %v580 = vsel %vm160, %v576, 0.0
    %581 = vadd.xlane.f32.xlu0 %v580
    %v582 = vpop.xlane.xlu0 %581
    %v583 = vmul.f32 %v579, %v570
    %v584 = vmul.f32 %v582, %v570
    %v585 = vadd.f32 %v583, 1e-05
    %v586 = vadd.f32 %v584, 1e-05
    %v587 = vrsqrt.pop %v585
    %v588 = vrsqrt.pop %v586
    %v589 = vmul.f32 %v573, %v587
    %v590 = vmul.f32 %v574, %v588
    %v591 = vlaneseq
    %v592 = vshrl.u32 %v591, 7
    %v593 = vsub.s32 2, %v592
    %v594 = vrot.slane %v104, %v593
    %v595 = vmul.f32 %v589, %v594
    %v596 = vmul.f32 %v590, %v594
    %v597 = vlaneseq
    %v598 = vshrl.u32 %v597, 7
    %v599 = vsub.s32 3, %v598
    %v600 = vrot.slane %v104, %v599
    %v601 = vadd.f32 %v595, %v600
    %v602 = vadd.f32 %v596, %v600
    %v603 = vpack.c.bf16 %v602, %v601
    %v604 = vlaneseq
    %v605 = vshrl.u32 %v604, 7
    %v606 = vsub.s32 4, %v605
    %v607 = vrot.slane %v104, %v606
    %v608 = vunpack.c.h.b16 %v93
    %v609 = vunpack.c.h.b16 %v96
    %v610 = vunpack.c.h.b16 %v99
    %v611 = vunpack.c.h.b16 %v102
    %v612 = vpack.c.b16 %v609, %v608
    %v613 = vpack.c.b16 %v611, %v610
    %v617 = vsel %vm160, %v603, 0
    %619 = vmatprep.subr.bf16.mxu0 0
    %620 = vmatpush1.bf16.msra.mxu0 0
    %621 = vmatprep.subr.bf16.mxu0 0
    %622 = vmatpush1.bf16.msra.mxu0 0
    %623 = vmatprep.subr.bf16.mxu0 0
    %624 = vmatpush1.bf16.msra.mxu0 0
    %625 = vmatprep.subr.bf16.mxu0 0
    %626 = vmatpush1.bf16.msra.mxu0 0
    %627 = vmatprep.subr.bf16.mxu0 0
    %628 = vmatpush1.bf16.msra.mxu0 0
    %629 = vmatprep.subr.bf16.mxu0 0
    %630 = vmatpush1.bf16.msra.mxu0 0
    %631 = vmatprep.subr.bf16.mxu0 0
    %632 = vmatpush1.bf16.msra.mxu0 %v613
    %633 = vmatprep.subr.bf16.mxu0 0
    %634 = vmatpush1.bf16.msra.mxu0 %v612
    %635 = vmatprep.subr.bf16.mxu0 0
    %636 = vmatpush2.bf16.msra.mxu0 0
    %637 = vmatprep.subr.bf16.mxu0 0
    %638 = vmatpush2.bf16.msra.mxu0 0
    %639 = vmatprep.subr.bf16.mxu0 0
    %640 = vmatpush2.bf16.msra.mxu0 0
    %641 = vmatprep.subr.bf16.mxu0 0
    %642 = vmatpush2.bf16.msra.mxu0 0
    %643 = vmatprep.subr.bf16.mxu0 0
    %644 = vmatpush2.bf16.msra.mxu0 0
    %645 = vmatprep.subr.bf16.mxu0 0
    %646 = vmatpush2.bf16.msra.mxu0 0
    %647 = vmatprep.subr.bf16.mxu0 0
    %648 = vmatpush2.bf16.msra.mxu0 0
    %649 = vmatprep.subr.bf16.mxu0 0
    %650 = vmatpush2.bf16.msra.mxu0 0
    %651 = vmatprep.mubr.bf16.mxu0 0
    %652 = vmatmul.mubr.bf16.gmra.mxu0 %v617
    %v653 = vpop.f32.mrf.mxu0
    %v654 = vadd.f32 %v607, %v653
    %v655 = vpop.f32.mrf.mxu0
    %v656 = vpop.f32.mrf.mxu0
    %v657 = vadd.f32 %v607, %v656
    %v658 = vpop.f32.mrf.mxu0
    %659 = vdwg.mxu0
    %v660 = vmul.f32 %v654, %v106
    %v661 = vmul.f32 %v657, %v109
    %v662 = vmul.f32 %v654, %v112
    %v663 = vmul.f32 %v657, %v115
    %v664 = vmul.f32 %v654, %v118
    %v665 = vmul.f32 %v657, %v121
    %v666 = vmul.f32 %v654, %v124
    %v667 = vmul.f32 %v657, %v127
    %v668 = vpack.c.bf16 %v661, %v660
    %v669 = vpack.c.bf16 %v663, %v662
    %v670 = vpack.c.bf16 %v665, %v664
    %v671 = vpack.c.bf16 %v667, %v666
    %v672 = vpack.c.bf16 %v214, %v210
    %674 = vrot.lane.b32.xlu0 %v672, 32
    %v675 = vpop.permute.xlu0 %674
    %v677 = vsel %vm160, %v668, 0
    %v680 = vsel %vm160, %v669, 0
    %v683 = vsel %vm160, %v670, 0
    %v686 = vsel %vm160, %v671, 0
    %v689 = vsel %vm160, %v675, 0
    %691 = vmatprep.subr.bf16.mxu0 0
    %692 = vmatpush1.bf16.xpose.msra.mxu0 0
    %693 = vmatprep.subr.bf16.mxu0 0
    %694 = vmatpush1.bf16.xpose.msra.mxu0 0
    %695 = vmatprep.subr.bf16.mxu0 0
    %696 = vmatpush1.bf16.xpose.msra.mxu0 0
    %697 = vmatprep.subr.bf16.mxu0 0
    %698 = vmatpush1.bf16.xpose.msra.mxu0 0
    %699 = vmatprep.subr.bf16.mxu0 0
    %700 = vmatpush1.bf16.xpose.msra.mxu0 0
    %701 = vmatprep.subr.bf16.mxu0 0
    %702 = vmatpush1.bf16.xpose.msra.mxu0 0
    %703 = vmatprep.subr.bf16.mxu0 0
    %704 = vmatpush1.bf16.xpose.msra.mxu0 0
    %705 = vmatprep.subr.bf16.mxu0 0
    %706 = vmatpush1.bf16.xpose.msra.mxu0 %v689
    %707 = vmatprep.subr.bf16.mxu0 0
    %708 = vmatpush2.bf16.xpose.msra.mxu0 0
    %709 = vmatprep.subr.bf16.mxu0 0
    %710 = vmatpush2.bf16.xpose.msra.mxu0 0
    %711 = vmatprep.subr.bf16.mxu0 0
    %712 = vmatpush2.bf16.xpose.msra.mxu0 0
    %713 = vmatprep.subr.bf16.mxu0 0
    %714 = vmatpush2.bf16.xpose.msra.mxu0 0
    %715 = vmatprep.subr.bf16.mxu0 0
    %716 = vmatpush2.bf16.xpose.msra.mxu0 0
    %717 = vmatprep.subr.bf16.mxu0 0
    %718 = vmatpush2.bf16.xpose.msra.mxu0 0
    %719 = vmatprep.subr.bf16.mxu0 0
    %720 = vmatpush2.bf16.xpose.msra.mxu0 0
    %721 = vmatprep.subr.bf16.mxu0 0
    %722 = vmatpush2.bf16.xpose.msra.mxu0 0
    %723 = vmatprep.mubr.bf16.mxu0 0
    %724 = vmatmul.mubr.bf16.gmra.mxu0 %v677
    %v725 = vpop.f32.mrf.mxu0
    %v726 = vadd.f32 %v108, %v725
    %v727 = vpop.f32.mrf.mxu0
    %v728 = vpop.f32.mrf.mxu0
    %v729 = vadd.f32 %v111, %v728
    %v730 = vpop.f32.mrf.mxu0
    %731 = vmatprep.mubr.bf16.mxu0 0
    %732 = vmatmul.mubr.bf16.gmra.mxu0 %v680
    %v733 = vpop.f32.mrf.mxu0
    %v734 = vadd.f32 %v114, %v733
    %v735 = vpop.f32.mrf.mxu0
    %v736 = vpop.f32.mrf.mxu0
    %v737 = vadd.f32 %v117, %v736
    %v738 = vpop.f32.mrf.mxu0
    %739 = vmatprep.mubr.bf16.mxu0 0
    %740 = vmatmul.mubr.bf16.gmra.mxu0 %v683
    %v741 = vpop.f32.mrf.mxu0
    %v742 = vadd.f32 %v120, %v741
    %v743 = vpop.f32.mrf.mxu0
    %v744 = vpop.f32.mrf.mxu0
    %v745 = vadd.f32 %v123, %v744
    %v746 = vpop.f32.mrf.mxu0
    %747 = vmatprep.mubr.bf16.mxu0 0
    %748 = vmatmul.mubr.bf16.gmra.mxu0 %v686
    %v749 = vpop.f32.mrf.mxu0
    %v750 = vadd.f32 %v126, %v749
    %v751 = vpop.f32.mrf.mxu0
    %v752 = vpop.f32.mrf.mxu0
    %v753 = vadd.f32 %v129, %v752
    %v754 = vpop.f32.mrf.mxu0
    %755 = vdwg.mxu0
    %v756 = vsel %vm314, %v726, -inf
    %757 = vmax.xlane.f32.xlu0 %v756
    %v758 = vpop.xlane.xlu0 %757
    %v759 = vsel %vm314, %v729, -inf
    %760 = vmax.xlane.f32.xlu0 %v759
    %v761 = vpop.xlane.xlu0 %760
    %v762 = vsel %vm314, %v734, -inf
    %763 = vmax.xlane.f32.xlu0 %v762
    %v764 = vpop.xlane.xlu0 %763
    %v765 = vsel %vm314, %v737, -inf
    %766 = vmax.xlane.f32.xlu0 %v765
    %v767 = vpop.xlane.xlu0 %766
    %v768 = vsel %vm314, %v742, -inf
    %769 = vmax.xlane.f32.xlu0 %v768
    %v770 = vpop.xlane.xlu0 %769
    %v771 = vsel %vm314, %v745, -inf
    %772 = vmax.xlane.f32.xlu0 %v771
    %v773 = vpop.xlane.xlu0 %772
    %v774 = vsel %vm314, %v750, -inf
    %775 = vmax.xlane.f32.xlu0 %v774
    %v776 = vpop.xlane.xlu0 %775
    %v777 = vsel %vm314, %v753, -inf
    %778 = vmax.xlane.f32.xlu0 %v777
    %v779 = vpop.xlane.xlu0 %778
    %v780 = vsub.f32 %v726, %v758
    %v781 = vsub.f32 %v729, %v761
    %v782 = vsub.f32 %v734, %v764
    %v783 = vsub.f32 %v737, %v767
    %v784 = vsub.f32 %v742, %v770
    %v785 = vsub.f32 %v745, %v773
    %v786 = vsub.f32 %v750, %v776
    %v787 = vsub.f32 %v753, %v779
    %v788 = vmul.f32 %v780, 1.442695
    %v789 = vpow.pop %v788
    %v790 = vmul.f32 %v781, 1.442695
    %v791 = vpow.pop %v790
    %v792 = vmul.f32 %v782, 1.442695
    %v793 = vpow.pop %v792
    %v794 = vmul.f32 %v783, 1.442695
    %v795 = vpow.pop %v794
    %v796 = vmul.f32 %v784, 1.442695
    %v797 = vpow.pop %v796
    %v798 = vmul.f32 %v785, 1.442695
    %v799 = vpow.pop %v798
    %v800 = vmul.f32 %v786, 1.442695
    %v801 = vpow.pop %v800
    %v802 = vmul.f32 %v787, 1.442695
    %v803 = vpow.pop %v802
    %v804 = vsel %vm314, %v789, 0.0
    %805 = vadd.xlane.f32.xlu0 %v804
    %v806 = vpop.xlane.xlu0 %805
    %v807 = vsel %vm314, %v791, 0.0
    %808 = vadd.xlane.f32.xlu0 %v807
    %v809 = vpop.xlane.xlu0 %808
    %v810 = vsel %vm314, %v793, 0.0
    %811 = vadd.xlane.f32.xlu0 %v810
    %v812 = vpop.xlane.xlu0 %811
    %v813 = vsel %vm314, %v795, 0.0
    %814 = vadd.xlane.f32.xlu0 %v813
    %v815 = vpop.xlane.xlu0 %814
    %v816 = vsel %vm314, %v797, 0.0
    %817 = vadd.xlane.f32.xlu0 %v816
    %v818 = vpop.xlane.xlu0 %817
    %v819 = vsel %vm314, %v799, 0.0
    %820 = vadd.xlane.f32.xlu0 %v819
    %v821 = vpop.xlane.xlu0 %820
    %v822 = vsel %vm314, %v801, 0.0
    %823 = vadd.xlane.f32.xlu0 %v822
    %v824 = vpop.xlane.xlu0 %823
    %v825 = vsel %vm314, %v803, 0.0
    %826 = vadd.xlane.f32.xlu0 %v825
    %v827 = vpop.xlane.xlu0 %826
    %v828 = vrcp.pop %v806
    %v829 = vrcp.pop %v809
    %v830 = vrcp.pop %v812
    %v831 = vrcp.pop %v815
    %v832 = vrcp.pop %v818
    %v833 = vrcp.pop %v821
    %v834 = vrcp.pop %v824
    %v835 = vrcp.pop %v827
    %v836 = vmul.f32 %v789, %v828
    %v837 = vmul.f32 %v791, %v829
    %v838 = vmul.f32 %v793, %v830
    %v839 = vmul.f32 %v795, %v831
    %v840 = vmul.f32 %v797, %v832
    %v841 = vmul.f32 %v799, %v833
    %v842 = vmul.f32 %v801, %v834
    %v843 = vmul.f32 %v803, %v835
    %v844 = vpack.c.bf16 %v837, %v836
    %v845 = vpack.c.bf16 %v839, %v838
    %v846 = vpack.c.bf16 %v841, %v840
    %v847 = vpack.c.bf16 %v843, %v842
    %v848 = vpack.c.bf16 %v216, %v212
    %v850 = vsel %vm314, %v844, 0
    %v853 = vsel %vm314, %v845, 0
    %v856 = vsel %vm314, %v846, 0
    %v859 = vsel %vm314, %v847, 0
    %861 = vmatprep.subr.bf16.mxu0 0
    %862 = vmatpush1.bf16.msra.mxu0 0
    %863 = vmatprep.subr.bf16.mxu0 0
    %864 = vmatpush1.bf16.msra.mxu0 0
    %865 = vmatprep.subr.bf16.mxu0 0
    %866 = vmatpush1.bf16.msra.mxu0 0
    %867 = vmatprep.subr.bf16.mxu0 0
    %868 = vmatpush1.bf16.msra.mxu0 0
    %869 = vmatprep.subr.bf16.mxu0 0
    %870 = vmatpush1.bf16.msra.mxu0 0
    %871 = vmatprep.subr.bf16.mxu0 0
    %872 = vmatpush1.bf16.msra.mxu0 0
    %873 = vmatprep.subr.bf16.mxu0 0
    %874 = vmatpush1.bf16.msra.mxu0 0
    %875 = vmatprep.subr.bf16.mxu0 0
    %876 = vmatpush1.bf16.msra.mxu0 %v848
    %877 = vmatprep.subr.bf16.mxu0 0
    %878 = vmatpush2.bf16.msra.mxu0 0
    %879 = vmatprep.subr.bf16.mxu0 0
    %880 = vmatpush2.bf16.msra.mxu0 0
    %881 = vmatprep.subr.bf16.mxu0 0
    %882 = vmatpush2.bf16.msra.mxu0 0
    %883 = vmatprep.subr.bf16.mxu0 0
    %884 = vmatpush2.bf16.msra.mxu0 0
    %885 = vmatprep.subr.bf16.mxu0 0
    %886 = vmatpush2.bf16.msra.mxu0 0
    %887 = vmatprep.subr.bf16.mxu0 0
    %888 = vmatpush2.bf16.msra.mxu0 0
    %889 = vmatprep.subr.bf16.mxu0 0
    %890 = vmatpush2.bf16.msra.mxu0 0
    %891 = vmatprep.subr.bf16.mxu0 0
    %892 = vmatpush2.bf16.msra.mxu0 0
    %893 = vmatprep.mubr.bf16.mxu0 0
    %894 = vmatmul.mubr.bf16.gmra.mxu0 %v850
    %v895 = vpop.f32.mrf.mxu0
    %v896 = vadd.f32 0.0, %v895
    %v897 = vpop.f32.mrf.mxu0
    %v898 = vpop.f32.mrf.mxu0
    %v899 = vadd.f32 0.0, %v898
    %v900 = vpop.f32.mrf.mxu0
    %901 = vmatprep.mubr.bf16.mxu0 0
    %902 = vmatmul.mubr.bf16.gmra.mxu0 %v853
    %v903 = vpop.f32.mrf.mxu0
    %v904 = vadd.f32 0.0, %v903
    %v905 = vpop.f32.mrf.mxu0
    %v906 = vpop.f32.mrf.mxu0
    %v907 = vadd.f32 0.0, %v906
    %v908 = vpop.f32.mrf.mxu0
    %909 = vmatprep.mubr.bf16.mxu0 0
    %910 = vmatmul.mubr.bf16.gmra.mxu0 %v856
    %v911 = vpop.f32.mrf.mxu0
    %v912 = vadd.f32 0.0, %v911
    %v913 = vpop.f32.mrf.mxu0
    %v914 = vpop.f32.mrf.mxu0
    %v915 = vadd.f32 0.0, %v914
    %v916 = vpop.f32.mrf.mxu0
    %917 = vmatprep.mubr.bf16.mxu0 0
    %918 = vmatmul.mubr.bf16.gmra.mxu0 %v859
    %v919 = vpop.f32.mrf.mxu0
    %v920 = vadd.f32 0.0, %v919
    %v921 = vpop.f32.mrf.mxu0
    %v922 = vpop.f32.mrf.mxu0
    %v923 = vadd.f32 0.0, %v922
    %v924 = vpop.f32.mrf.mxu0
    %925 = vdwg.mxu0
    %v926 = vmul.f32 %v896, %v106
    %v927 = vmul.f32 %v899, %v109
    %v928 = vmul.f32 %v904, %v112
    %v929 = vmul.f32 %v907, %v115
    %v930 = vmul.f32 %v912, %v118
    %v931 = vmul.f32 %v915, %v121
    %v932 = vmul.f32 %v920, %v124
    %v933 = vmul.f32 %v923, %v127
    %v934 = vadd.f32 %v926, %v928
    %v935 = vadd.f32 %v927, %v929
    %v936 = vadd.f32 %v934, %v930
    %v937 = vadd.f32 %v935, %v931
    %v938 = vadd.f32 %v936, %v932
    %v939 = vadd.f32 %v937, %v933
    %v940 = vpack.c.bf16 %v939, %v938
    %v941 = vlaneseq
    %v942 = vshrl.u32 %v941, 7
    %v943 = vsub.s32 5, %v942
    %v944 = vrot.slane %v104, %v943
    %v949 = vunpack.c.l.b16 %v94
    %v950 = vunpack.c.l.b16 %v97
    %v951 = vunpack.c.l.b16 %v100
    %v952 = vunpack.c.l.b16 %v103
    %v953 = vpack.c.b16 %v950, %v949
    %v954 = vpack.c.b16 %v952, %v951
    %v958 = vsel %vm160, %v940, 0
    %960 = vmatprep.subr.bf16.mxu0 0
    %961 = vmatpush1.bf16.msra.mxu0 0
    %962 = vmatprep.subr.bf16.mxu0 0
    %963 = vmatpush1.bf16.msra.mxu0 0
    %964 = vmatprep.subr.bf16.mxu0 0
    %965 = vmatpush1.bf16.msra.mxu0 0
    %966 = vmatprep.subr.bf16.mxu0 0
    %967 = vmatpush1.bf16.msra.mxu0 0
    %968 = vmatprep.subr.bf16.mxu0 0
    %969 = vmatpush1.bf16.msra.mxu0 0
    %970 = vmatprep.subr.bf16.mxu0 0
    %971 = vmatpush1.bf16.msra.mxu0 0
    %972 = vmatprep.subr.bf16.mxu0 0
    %973 = vmatpush1.bf16.msra.mxu0 %v954
    %974 = vmatprep.subr.bf16.mxu0 0
    %975 = vmatpush1.bf16.msra.mxu0 %v953
    %976 = vmatprep.subr.bf16.mxu0 0
    %977 = vmatpush2.bf16.msra.mxu0 0
    %978 = vmatprep.subr.bf16.mxu0 0
    %979 = vmatpush2.bf16.msra.mxu0 0
    %980 = vmatprep.subr.bf16.mxu0 0
    %981 = vmatpush2.bf16.msra.mxu0 0
    %982 = vmatprep.subr.bf16.mxu0 0
    %983 = vmatpush2.bf16.msra.mxu0 0
    %984 = vmatprep.subr.bf16.mxu0 0
    %985 = vmatpush2.bf16.msra.mxu0 0
    %986 = vmatprep.subr.bf16.mxu0 0
    %987 = vmatpush2.bf16.msra.mxu0 0
    %988 = vmatprep.subr.bf16.mxu0 0
    %989 = vmatpush2.bf16.msra.mxu0 0
    %990 = vmatprep.subr.bf16.mxu0 0
    %991 = vmatpush2.bf16.msra.mxu0 0
    %992 = vmatprep.mubr.bf16.mxu0 0
    %993 = vmatmul.mubr.bf16.gmra.mxu0 %v958
    %v994 = vpop.f32.mrf.mxu0
    %v995 = vadd.f32 %v944, %v994
    %v996 = vpop.f32.mrf.mxu0
    %v997 = vpop.f32.mrf.mxu0
    %v998 = vadd.f32 %v944, %v997
    %v999 = vpop.f32.mrf.mxu0
    %1000 = vdwg.mxu0
    %v1001 = vadd.f32 %v601, %v995
    %v1002 = vadd.f32 %v602, %v998
    %v1003 = vsel %vm160, %v1001, 0.0
    %1004 = vadd.xlane.f32.xlu0 %v1003
    %v1005 = vpop.xlane.xlu0 %1004
    %v1006 = vsel %vm160, %v1002, 0.0
    %1007 = vadd.xlane.f32.xlu0 %v1006
    %v1008 = vpop.xlane.xlu0 %1007
    %v1009 = vmul.f32 %v1005, %v570
    %v1010 = vmul.f32 %v1008, %v570
    %v1011 = vsub.f32 %v1001, %v1009
    %v1012 = vsub.f32 %v1002, %v1010
    %v1013 = vmul.f32 %v1011, %v1011
    %v1014 = vmul.f32 %v1012, %v1012
    %v1015 = vsel %vm160, %v1013, 0.0
    %1016 = vadd.xlane.f32.xlu0 %v1015
    %v1017 = vpop.xlane.xlu0 %1016
    %v1018 = vsel %vm160, %v1014, 0.0
    %1019 = vadd.xlane.f32.xlu0 %v1018
    %v1020 = vpop.xlane.xlu0 %1019
    %v1021 = vmul.f32 %v1017, %v570
    %v1022 = vmul.f32 %v1020, %v570
    %v1023 = vadd.f32 %v1021, 1e-05
    %v1024 = vadd.f32 %v1022, 1e-05
    %v1025 = vrsqrt.pop %v1023
    %v1026 = vrsqrt.pop %v1024
    %v1027 = vmul.f32 %v1011, %v1025
    %v1028 = vmul.f32 %v1012, %v1026
    %v1029 = vpack.c.bf16 %v1028, %v1027
    %v1030 = vlaneseq
    %v1031 = vshrl.u32 %v1030, 7
    %v1032 = vsub.s32 6, %v1031
    %v1033 = vrot.slane %v104, %v1032
    %v1034 = vunpack.c.h.b16 %v94
    %v1035 = vunpack.c.h.b16 %v97
    %v1036 = vunpack.c.h.b16 %v100
    %v1037 = vunpack.c.h.b16 %v103
    %v1038 = vpack.c.b16 %v1035, %v1034
    %v1039 = vpack.c.b16 %v1037, %v1036
    %v1043 = vsel %vm160, %v1029, 0
    %1045 = vmatprep.subr.bf16.mxu0 0
    %1046 = vmatpush1.bf16.msra.mxu0 0
    %1047 = vmatprep.subr.bf16.mxu0 0
    %1048 = vmatpush1.bf16.msra.mxu0 0
    %1049 = vmatprep.subr.bf16.mxu0 0
    %1050 = vmatpush1.bf16.msra.mxu0 0
    %1051 = vmatprep.subr.bf16.mxu0 0
    %1052 = vmatpush1.bf16.msra.mxu0 0
    %1053 = vmatprep.subr.bf16.mxu0 0
    %1054 = vmatpush1.bf16.msra.mxu0 0
    %1055 = vmatprep.subr.bf16.mxu0 0
    %1056 = vmatpush1.bf16.msra.mxu0 0
    %1057 = vmatprep.subr.bf16.mxu0 0
    %1058 = vmatpush1.bf16.msra.mxu0 %v1039
    %1059 = vmatprep.subr.bf16.mxu0 0
    %1060 = vmatpush1.bf16.msra.mxu0 %v1038
    %1061 = vmatprep.subr.bf16.mxu0 0
    %1062 = vmatpush2.bf16.msra.mxu0 0
    %1063 = vmatprep.subr.bf16.mxu0 0
    %1064 = vmatpush2.bf16.msra.mxu0 0
    %1065 = vmatprep.subr.bf16.mxu0 0
    %1066 = vmatpush2.bf16.msra.mxu0 0
    %1067 = vmatprep.subr.bf16.mxu0 0
    %1068 = vmatpush2.bf16.msra.mxu0 0
    %1069 = vmatprep.subr.bf16.mxu0 0
    %1070 = vmatpush2.bf16.msra.mxu0 0
    %1071 = vmatprep.subr.bf16.mxu0 0
    %1072 = vmatpush2.bf16.msra.mxu0 0
    %1073 = vmatprep.subr.bf16.mxu0 0
    %1074 = vmatpush2.bf16.msra.mxu0 0
    %1075 = vmatprep.subr.bf16.mxu0 0
    %1076 = vmatpush2.bf16.msra.mxu0 0
    %1077 = vmatprep.mubr.bf16.mxu0 0
    %1078 = vmatmul.mubr.bf16.gmra.mxu0 %v1043
    %v1079 = vpop.f32.mrf.mxu0
    %v1080 = vadd.f32 %v1033, %v1079
    %v1081 = vpop.f32.mrf.mxu0
    %v1082 = vpop.f32.mrf.mxu0
    %v1083 = vadd.f32 %v1033, %v1082
    %v1084 = vpop.f32.mrf.mxu0
    %1085 = vdwg.mxu0
    %1086 = vst.msk [vmem:[#allocation11] sm:$0xff] %vm160, %v1080
    %1087 = vst.msk [vmem:[#allocation11 + $0x8] sm:$0xff] %vm160, %v1083
    // Predicated region
    $region42: #{decoder_layer_forward.1} parent=1 // pred_check
      _
    $region43: #{decoder_layer_forward.1} parent=1 // pred_check_branch
      %1089 = sbr.rel (0) target = $region45
    $region44: #{decoder_layer_forward.1} parent=1 // pred_region
      %s1091 = ssub.s32 256, 256
      %1092 = vsyncadd [#allocation4], %s1091
      %s1093 = sshll.u32 [#allocation11], 4
      %s1094 = int_to_ptr.vmem [resolvable:$true] %s1093
      %1099 = dma.vmem_to_hbm [thread:$0]  %s1094, 256, %s5, [#allocation4], 128, 128, 8
    $region45: #{decoder_layer_forward.1} parent=1 // pred_fallthru
      _
    // Predicated region
    $region46: #{decoder_layer_forward.1} parent=1 // pred_check
      _
    $region47: #{decoder_layer_forward.1} parent=1 // pred_check_branch
      %1101 = sbr.rel (0) target = $region49
    $region48: #{decoder_layer_forward.1} parent=1 // pred_region
      %1102 = dma.done [#allocation4], 256
    $region49: #{decoder_layer_forward.1} parent=1 // pred_fallthru
      _
    %1103 = vsyncpa [#allocation3], 1
    %1104 = vsyncpa [#allocation6], 1
    %1105 = vsyncpa [#allocation9], 1
    %1106 = vsyncpa [#allocation4], 1

</llo_original>
